<compile_context>
chip_gen: v6e
topology: v6e:2x2x1
jax: 0.10.0
libtpu: 0.0.40
codegen_flags: <defaults>
</compile_context>

<pallas_src>
import functools

import jax
import jax.numpy as jnp
from jax.experimental import pallas as pl
from jax.experimental.pallas import tpu as pltpu


# Keep the per-step tile set comfortably inside v7x's 64 MiB physical VMEM
# (also leaves room for Mosaic-internal scratch).
_VMEM_TILE_BUDGET = 40 << 20


def _round_up(x: int, m: int) -> int:
    return ((x + m - 1) // m) * m


def _vmem_tile_bytes(tm: int, tn: int, tk: int, multi_k: bool,
                     x_itemsize: int = 4) -> int:
    """Estimate of the double-buffered VMEM footprint of one grid step."""
    return (2 * tm * tk * x_itemsize      # x double buffer (f32 or bf16 stream)
            + 2 * tk * tn * 2             # W double buffer (bf16)
            + 2 * 8 * tn * 4              # bias double buffer (sublane-padded)
            + 2 * tm * tn * 4             # output double buffer (f32)
            + (tm * tn * 4 if multi_k else 0))   # f32 accumulator scratch


# ---------------------------------------------------------------------------
# Kernel
# ---------------------------------------------------------------------------
def logistic_kernel(x_ref, w_ref, b_ref, o_ref, *acc, nk):
    """One (i, j, k) grid step of y = sigmoid(x @ W^T + b).

    x_ref: (tm, tk) f32/bf16 activation tile (cast to W's dtype on the VPU)
    w_ref: (tk, tn) bf16     pre-transposed weight tile, canonical (k, n) layout
    b_ref: (1,  tn) f32      bias tile
    o_ref: (tm, tn) f32      output tile
    acc:   optional (tm, tn) f32 VMEM accumulator (only allocated when nk > 1)
    nk:    static number of k steps (Python int, bound via functools.partial)
    """
    x = x_ref[...].astype(w_ref.dtype)          # VPU cast; no-op if already bf16
    prod = jnp.dot(x, w_ref[...], preferred_element_type=jnp.float32)

    def epilogue(z):
        z = z + b_ref[...]                                   # f32 epilogue
        return pl.reciprocal(1.0 + jnp.exp(-z), approx=False).astype(o_ref.dtype)

    if nk == 1:
        # Single-k fast path: no accumulator round-trip at all.
        o_ref[...] = epilogue(prod)
    else:
        acc_ref = acc[0]
        k = pl.program_id(2)

        @pl.when(k == 0)
        def _():
            acc_ref[...] = prod                 # assign (saves a zero-init RMW)

        @pl.when(k > 0)
        def _():
            acc_ref[...] += prod

        @pl.when(k == nk - 1)
        def _():
            o_ref[...] = epilogue(acc_ref[...])


# ---------------------------------------------------------------------------
# One-time parameter preparation (hoisted out of the per-call hot path)
# ---------------------------------------------------------------------------
def _choose_nk_tiles(label: int, vocab: int, tn=None, tk=None):
    n_pad = _round_up(label, 128)
    k_pad = _round_up(vocab, 128)
    if tn is None:
        tn = n_pad if n_pad <= 512 else 512
    tn = min(_round_up(tn, 128), n_pad)
    if tk is None:
        tk = k_pad if k_pad <= 2048 else 2048
    tk = min(_round_up(tk, 128), k_pad)
    N = _round_up(n_pad, tn)
    K = _round_up(k_pad, tk)
    return tn, tk, N, K


def prepare_logistic_params(weight, bias, *, tn=None, tk=None,
                            compute_dtype=jnp.bfloat16):
    """Pre-transpose/pad/cast the nn.Linear parameters ONCE for reuse.

    weight: (label, vocab) f32   (native nn.Linear layout)
    bias:   (label,)       f32
    Returns a dict consumed by logistic_forward.
    """
    label, vocab = weight.shape
    assert bias.shape == (label,)
    tn, tk, N, K = _choose_nk_tiles(label, vocab, tn, tk)
    # (label, vocab) -> (vocab, label) -> pad to (K, N), cast to bf16.  Zero
    # padding contributes nothing to the dot.
    w_p = jnp.pad(weight.T, ((0, K - vocab), (0, N - label))).astype(compute_dtype)
    b_p = jnp.pad(bias, (0, N - label)).reshape(1, N).astype(jnp.float32)
    return dict(w=w_p, b=b_p, label=label, vocab=vocab, tn=tn, tk=tk)


# ---------------------------------------------------------------------------
# Forward
# ---------------------------------------------------------------------------
@functools.partial(jax.jit, static_argnames=("label", "tm", "tn", "tk"))
def _forward_impl(bow_vec, w_p, b_p, *, label, tm, tn, tk):
    batch, vocab = bow_vec.shape
    K, N = w_p.shape
    M = _round_up(batch, tm)
    nk = K // tk
    nj = N // tn

    # x stream: f32 read + in-kernel bf16 cast when it is streamed at most
    # twice; otherwise a single wrapper cast pass (bf16) pays for itself since
    # x is re-read once per j block.
    x_dtype = jnp.float32 if nj <= 2 else w_p.dtype
    if M != batch or K != vocab:
        x_p = jnp.pad(bow_vec, ((0, M - batch), (0, K - vocab)))
    else:
        x_p = bow_vec
    x_p = x_p.astype(x_dtype)

    grid = (M // tm, nj, nk)
    scratch = [pltpu.VMEM((tm, tn), jnp.float32)] if nk > 1 else []

    vmem_bytes = _vmem_tile_bytes(tm, tn, tk, nk > 1,
                                  x_itemsize=jnp.dtype(x_dtype).itemsize)
    vmem_limit = int(min(max(vmem_bytes + (4 << 20), 16 << 20), 48 << 20))

    out = pl.pallas_call(
        functools.partial(logistic_kernel, nk=nk),
        out_shape=jax.ShapeDtypeStruct((M, N), jnp.float32),
        grid_spec=pltpu.PrefetchScalarGridSpec(
            num_scalar_prefetch=0,
            grid=grid,
            in_specs=[
                pl.BlockSpec((tm, tk), lambda i, j, k: (i, k)),   # activations
                pl.BlockSpec((tk, tn), lambda i, j, k: (k, j)),   # weight (K, N)
                pl.BlockSpec((1, tn), lambda i, j, k: (0, j)),    # bias
            ],
            out_specs=pl.BlockSpec((tm, tn), lambda i, j, k: (i, j)),
            scratch_shapes=scratch,
        ),
        compiler_params=pltpu.CompilerParams(
            dimension_semantics=("parallel", "parallel", "arbitrary"),
            vmem_limit_bytes=vmem_limit,
        ),
    )(x_p, w_p, b_p)

    return out[:batch, :label]


def logistic_forward(bow_vec, params, *, tm=None):
    """y = sigmoid(bow_vec @ W^T + b) using pre-prepared parameters."""
    batch, vocab = bow_vec.shape
    assert vocab == params["vocab"]
    tn, tk = params["tn"], params["tk"]
    K, N = params["w"].shape
    multi_k = (K // tk) > 1

    # Cover the whole (padded) batch with one i block whenever the VMEM budget
    # allows, so the weight matrix is streamed from HBM exactly once.
    m_pad = _round_up(batch, 16)          # 16: bf16 sublane packing
    if tm is None:
        tm = m_pad
        while tm > 256 and _vmem_tile_bytes(tm, tn, tk, multi_k) > _VMEM_TILE_BUDGET:
            tm = _round_up(tm // 2, 16)
    else:
        tm = min(_round_up(tm, 16), m_pad)
    M = _round_up(batch, tm)

    # v7x has 2 TensorCores: if the grid would be (1, 1, nk), halve the label
    # tile so a 'parallel' axis has >= 2 blocks (no extra weight traffic).
    if M // tm == 1 and N // tn == 1 and tn % 256 == 0:
        tn //= 2

    return _forward_impl(bow_vec, params["w"], params["b"],
                         label=params["label"], tm=tm, tn=tn, tk=tk)


def logistic_r(bow_vec, weight, bias, *, tm=None, tn=None, tk=None):
    """One-shot convenience wrapper (prep + forward); prefer preparing once."""
    params = prepare_logistic_params(weight, bias, tn=tn, tk=tk)
    return logistic_forward(bow_vec, params, tm=tm)


# ---------------------------------------------------------------------------
# Self-test
# ---------------------------------------------------------------------------
if __name__ == "__main__":
    key = jax.random.PRNGKey(0)

    def make_problem(k, batch, vocab_size, label_size):
        k_x, k_w, k_b = jax.random.split(k, 3)
        bound = 1.0 / (vocab_size ** 0.5)   # nn.Linear-style init
        x = jax.random.normal(k_x, (batch, vocab_size), dtype=jnp.float32)
        w = jax.random.uniform(k_w, (label_size, vocab_size), minval=-bound,
                               maxval=bound, dtype=jnp.float32)
        b = jax.random.uniform(k_b, (label_size,), minval=-bound, maxval=bound,
                               dtype=jnp.float32)
        return x, w, b

    k1, k2 = jax.random.split(key)

    # Small shapes matching the module: batch=8, vocab_size=32, label_size=8.
    # Prepare-once path (the intended usage for repeated inference calls).
    x, w, b = make_problem(k1, batch=8, vocab_size=32, label_size=8)
    params = prepare_logistic_params(w, b)
    y = jax.block_until_ready(logistic_forward(x, params))
    y_ref = jax.nn.sigmoid(x @ w.T + b)
    assert y.shape == (8, 8)
    assert jnp.allclose(y, y_ref, atol=2e-2, rtol=2e-2), \
        float(jnp.max(jnp.abs(y - y_ref)))

    # Larger problem exercising the multi-k accumulator path (one-shot API).
    x2, w2, b2 = make_problem(k2, batch=16, vocab_size=512, label_size=20)
    y2 = jax.block_until_ready(logistic_r(x2, w2, b2, tk=128))
    y2_ref = jax.nn.sigmoid(x2 @ w2.T + b2)
    assert y2.shape == (16, 20)
    assert jnp.allclose(y2, y2_ref, atol=2e-2, rtol=2e-2), \
        float(jnp.max(jnp.abs(y2 - y2_ref)))

    print("KERNEL_OK")
</pallas_src>

<mosaic_0001>
module attributes {stable_mosaic.version = 11 : i64} {
  func.func @logistic_kernel(%arg0: i32, %arg1: i32, %arg2: i32, %arg3: memref<16x128xf32, #tpu.memory_space<vmem>>, %arg4: memref<128x128xbf16, #tpu.memory_space<vmem>>, %arg5: memref<1x128xf32, #tpu.memory_space<vmem>>, %arg6: memref<16x128xf32, #tpu.memory_space<vmem>>) attributes {dimension_semantics = [#tpu.dimension_semantics<parallel>, #tpu.dimension_semantics<parallel>, #tpu.dimension_semantics<arbitrary>], iteration_bounds = array<i64: 1, 1, 1>, scalar_prefetch = 0 : i64, scratch_operands = 0 : i64, tpu.core_type = #tpu.core_type<tc>, window_params = [{transform_indices = @transform_0, window_bounds = array<i64: 16, 128>}, {transform_indices = @transform_1, window_bounds = array<i64: 128, 128>}, {transform_indices = @transform_2, window_bounds = array<i64: 1, 128>}, {transform_indices = @transform_3, window_bounds = array<i64: 16, 128>}]} {
    %c0 = arith.constant 0 : index
    %c0_0 = arith.constant 0 : index
    %0 = vector.load %arg3[%c0, %c0_0] : memref<16x128xf32, #tpu.memory_space<vmem>>, vector<16x128xf32>
    %1 = arith.truncf %0 : vector<16x128xf32> to vector<16x128xbf16>
    %c0_1 = arith.constant 0 : index
    %c0_2 = arith.constant 0 : index
    %2 = vector.load %arg4[%c0_1, %c0_2] : memref<128x128xbf16, #tpu.memory_space<vmem>>, vector<128x128xbf16>
    %cst = arith.constant dense<0.000000e+00> : vector<16x128xf32>
    %3 = tpu.matmul %1, %2, %cst {dimension_numbers = #tpu.dot_dimension_numbers<[1], [0], [0], [1], [0, 0, 1, 1], [], []>} : vector<16x128xbf16>, vector<128x128xbf16>, vector<16x128xf32> -> vector<16x128xf32>
    %c0_3 = arith.constant 0 : index
    %c0_4 = arith.constant 0 : index
    %4 = vector.load %arg5[%c0_3, %c0_4] : memref<1x128xf32, #tpu.memory_space<vmem>>, vector<1x128xf32>
    %5 = vector.broadcast %4 : vector<1x128xf32> to vector<16x128xf32>
    %6 = arith.addf %3, %5 : vector<16x128xf32>
    %cst_5 = arith.constant 0.000000e+00 : f32
    %7 = vector.broadcast %cst_5 : f32 to vector<16x128xf32>
    %8 = arith.subf %7, %6 : vector<16x128xf32>
    %9 = math.exp %8 : vector<16x128xf32>
    %cst_6 = arith.constant 1.000000e+00 : f32
    %10 = vector.broadcast %cst_6 : f32 to vector<16x128xf32>
    %11 = arith.addf %10, %9 : vector<16x128xf32>
    %12 = tpu.reciprocal %11 : vector<16x128xf32> -> vector<16x128xf32>
    %c0_7 = arith.constant 0 : index
    %c0_8 = arith.constant 0 : index
    %13 = vector.load %arg6[%c0_7, %c0_8] : memref<16x128xf32, #tpu.memory_space<vmem>>, vector<16x128xf32>
    tpu.vector_store %arg6[%c0_7, %c0_8], %12 {strides = array<i32>} : memref<16x128xf32, #tpu.memory_space<vmem>>, vector<16x128xf32>,
    return
  }
  func.func @transform_0(%arg0: i32, %arg1: i32, %arg2: i32) -> (i32, i32) {
    %c0_i32 = arith.constant 0 : i32
    return %arg0, %arg2 : i32, i32
  }
  func.func @transform_1(%arg0: i32, %arg1: i32, %arg2: i32) -> (i32, i32) {
    %c0_i32 = arith.constant 0 : i32
    return %arg2, %arg1 : i32, i32
  }
  func.func @transform_2(%arg0: i32, %arg1: i32, %arg2: i32) -> (i32, i32) {
    %c0_i32 = arith.constant 0 : i32
    %c0_i32_0 = arith.constant 0 : i32
    return %c0_i32, %arg1 : i32, i32
  }
  func.func @transform_3(%arg0: i32, %arg1: i32, %arg2: i32) -> (i32, i32) {
    %c0_i32 = arith.constant 0 : i32
    return %arg0, %arg1 : i32, i32
  }
}

</mosaic_0001>

<llo_original>
// kernel: _forward_impl.1
$region0: #{_forward_impl.1}
  #allocation0 [shape = 'u32[]', space=smem, size = 0x4, offset = 0x4, fixed_abs, tag = 'smem constant byte address 0x4 - core index']
  #allocation1 [shape = 'u32[144,128]{1,0:T(1,128)}', space=vmem, size = 0x12000, scoped, tag = 'internal scratch']
  %s0 = inlined_call_operand.vmem [shape: f32[16,128], index: 0, kind: input, shape index: {}]
  %s1 = inlined_call_operand.hbm [shape: bf16[128,128], index: 1, kind: input, shape index: {}]
  %s2 = inlined_call_operand.vmem [shape: f32[1,128], index: 2, kind: input, shape index: {}]
  %s3 = inlined_call_operand.vmem [shape: f32[16,128], index: 3, kind: output, shape index: {}]
  %s4 = sld [smem:[#allocation0]]
  $region26: #{_forward_impl.1} parent=0
    _
  %s6 = ssub.s32 1, %s4
  %s7 = scalar_select 0, %s6, %s4
  $region1: #{_forward_impl.1} parent=0
    #allocation2 [shape = 'u8[32768]{0}', space=vmem, size = 0x8000, scoped, tag = 'input window, operand 1, single buffered']
    #allocation3 [shape = 's32[1]{0}', space=sflag, size = 0x4, scoped, tag = 'scoped memory for _forward_impl.1']
    %8 = vsyncpa [#allocation3], 0
    // Predicated region
    $region2: #{_forward_impl.1} parent=1 // pred_check
      _
    $region3: #{_forward_impl.1} parent=1 // pred_check_branch
      %10 = sbr.rel (0) target = $region5
    $region4: #{_forward_impl.1} parent=1 // pred_region
      _
    $region5: #{_forward_impl.1} parent=1 // pred_fallthru
      _
    // Predicated region
    $region6: #{_forward_impl.1} parent=1 // pred_check
      _
    $region7: #{_forward_impl.1} parent=1 // pred_check_branch
      %12 = sbr.rel (0) target = $region9
    $region8: #{_forward_impl.1} parent=1 // pred_region
      %s14 = ssub.s32 1024, 1024
      %15 = vsyncadd [#allocation3], %s14
      %s16 = sshll.u32 [#allocation2], 4
      %s17 = int_to_ptr.vmem [resolvable:$true] %s16
      %22 = dma.hbm_to_vmem [thread:$0]  %s1, 1024, %s17, [#allocation3], 64, 64, 4
    $region9: #{_forward_impl.1} parent=1 // pred_fallthru
      _
    // Predicated region
    $region10: #{_forward_impl.1} parent=1 // pred_check
      _
    $region11: #{_forward_impl.1} parent=1 // pred_check_branch
      %24 = sbr.rel (0) target = $region13
    $region12: #{_forward_impl.1} parent=1 // pred_region
      _
    $region13: #{_forward_impl.1} parent=1 // pred_fallthru
      _
    // Predicated region
    $region14: #{_forward_impl.1} parent=1 // pred_check
      _
    $region15: #{_forward_impl.1} parent=1 // pred_check_branch
      %26 = sbr.rel (0) target = $region17
    $region16: #{_forward_impl.1} parent=1 // pred_region
      %27 = dma.done [#allocation3], 1024
    $region17: #{_forward_impl.1} parent=1 // pred_fallthru
      _
    %v29 = vld [vmem:[%s0] sm:$0xff]
    %v30 = vld [vmem:[%s0 + $0x8] sm:$0xff]
    %v31 = vpack.c.bf16 %v30, %v29
    %v32 = vld [vmem:[#allocation2] sm:$0xf]
    %v33 = vld [vmem:[#allocation2 + $0x4] sm:$0xf]
    %v34 = vld [vmem:[#allocation2 + $0x8] sm:$0xf]
    %v35 = vld [vmem:[#allocation2 + $0xc] sm:$0xf]
    %v36 = vld [vmem:[#allocation2 + $0x10] sm:$0xf]
    %v37 = vld [vmem:[#allocation2 + $0x14] sm:$0xf]
    %v38 = vld [vmem:[#allocation2 + $0x18] sm:$0xf]
    %v39 = vld [vmem:[#allocation2 + $0x1c] sm:$0xf]
    %v40 = vld [vmem:[#allocation2 + $0x20] sm:$0xf]
    %v41 = vld [vmem:[#allocation2 + $0x24] sm:$0xf]
    %v42 = vld [vmem:[#allocation2 + $0x28] sm:$0xf]
    %v43 = vld [vmem:[#allocation2 + $0x2c] sm:$0xf]
    %v44 = vld [vmem:[#allocation2 + $0x30] sm:$0xf]
    %v45 = vld [vmem:[#allocation2 + $0x34] sm:$0xf]
    %v46 = vld [vmem:[#allocation2 + $0x38] sm:$0xf]
    %v47 = vld [vmem:[#allocation2 + $0x3c] sm:$0xf]
    %v48 = vld [vmem:[%s2] sm:$0x1]
    %v50 = vlaneseq
    %v51 = vshrl.u32 %v50, 7
    %v52 = vsub.s32 0, %v51
    %v53 = vrot.slane %v48, %v52
    %v71 = vunpack.c.l.b16 %v32
    %v72 = vunpack.c.l.b16 %v33
    %v73 = vunpack.c.l.b16 %v34
    %v74 = vunpack.c.l.b16 %v35
    %v75 = vunpack.c.l.b16 %v36
    %v76 = vunpack.c.l.b16 %v37
    %v77 = vunpack.c.l.b16 %v38
    %v78 = vunpack.c.l.b16 %v39
    %v79 = vunpack.c.l.b16 %v40
    %v80 = vunpack.c.l.b16 %v41
    %v81 = vunpack.c.l.b16 %v42
    %v82 = vunpack.c.l.b16 %v43
    %v83 = vunpack.c.l.b16 %v44
    %v84 = vunpack.c.l.b16 %v45
    %v85 = vunpack.c.l.b16 %v46
    %v86 = vunpack.c.l.b16 %v47
    %v87 = vpack.c.b16 %v72, %v71
    %v88 = vpack.c.b16 %v74, %v73
    %v89 = vpack.c.b16 %v76, %v75
    %v90 = vpack.c.b16 %v78, %v77
    %v91 = vpack.c.b16 %v80, %v79
    %v92 = vpack.c.b16 %v82, %v81
    %v93 = vpack.c.b16 %v84, %v83
    %v94 = vpack.c.b16 %v86, %v85
    %103 = vmatprep.subr.bf16.mxu0 0
    %104 = vmatpush1.bf16.msra.mxu0 %v94
    %105 = vmatprep.subr.bf16.mxu0 0
    %106 = vmatpush1.bf16.msra.mxu0 %v93
    %107 = vmatprep.subr.bf16.mxu0 0
    %108 = vmatpush1.bf16.msra.mxu0 %v92
    %109 = vmatprep.subr.bf16.mxu0 0
    %110 = vmatpush1.bf16.msra.mxu0 %v91
    %111 = vmatprep.subr.bf16.mxu0 0
    %112 = vmatpush1.bf16.msra.mxu0 %v90
    %113 = vmatprep.subr.bf16.mxu0 0
    %114 = vmatpush1.bf16.msra.mxu0 %v89
    %115 = vmatprep.subr.bf16.mxu0 0
    %116 = vmatpush1.bf16.msra.mxu0 %v88
    %117 = vmatprep.subr.bf16.mxu0 0
    %118 = vmatpush1.bf16.msra.mxu0 %v87
    %119 = vmatprep.subr.bf16.mxu0 0
    %120 = vmatpush2.bf16.msra.mxu0 0
    %121 = vmatprep.subr.bf16.mxu0 0
    %122 = vmatpush2.bf16.msra.mxu0 0
    %123 = vmatprep.subr.bf16.mxu0 0
    %124 = vmatpush2.bf16.msra.mxu0 0
    %125 = vmatprep.subr.bf16.mxu0 0
    %126 = vmatpush2.bf16.msra.mxu0 0
    %127 = vmatprep.subr.bf16.mxu0 0
    %128 = vmatpush2.bf16.msra.mxu0 0
    %129 = vmatprep.subr.bf16.mxu0 0
    %130 = vmatpush2.bf16.msra.mxu0 0
    %131 = vmatprep.subr.bf16.mxu0 0
    %132 = vmatpush2.bf16.msra.mxu0 0
    %133 = vmatprep.subr.bf16.mxu0 0
    %134 = vmatpush2.bf16.msra.mxu0 0
    %135 = vmatprep.mubr.bf16.mxu0 0
    %136 = vmatmul.mubr.bf16.gmra.mxu0 %v31
    %v137 = vpop.f32.mrf.mxu0
    %v138 = vadd.f32 %v53, %v137
    %v139 = vpop.f32.mrf.mxu0
    %v140 = vpop.f32.mrf.mxu0
    %v141 = vadd.f32 %v53, %v140
    %v142 = vpop.f32.mrf.mxu0
    %143 = vdwg.mxu0
    %v144 = vsub.f32 0.0, %v138
    %v145 = vsub.f32 0.0, %v141
    %v146 = vmul.f32 %v144, 1.442695
    %v147 = vpow.pop %v146
    %v148 = vmul.f32 %v145, 1.442695
    %v149 = vpow.pop %v148
    %v150 = vadd.f32 %v147, 1.0
    %v151 = vadd.f32 %v149, 1.0
    %v152 = vrcp.pop %v150
    %v153 = vrcp.pop %v151
    %154 = vst [vmem:[%s3] sm:$0xff] %v152
    %155 = vst [vmem:[%s3 + $0x8] sm:$0xff] %v153
    // Predicated region
    $region18: #{_forward_impl.1} parent=1 // pred_check
      _
    $region19: #{_forward_impl.1} parent=1 // pred_check_branch
      %157 = sbr.rel (0) target = $region21
    $region20: #{_forward_impl.1} parent=1 // pred_region
      _
    $region21: #{_forward_impl.1} parent=1 // pred_fallthru
      _
    // Predicated region
    $region22: #{_forward_impl.1} parent=1 // pred_check
      _
    $region23: #{_forward_impl.1} parent=1 // pred_check_branch
      %159 = sbr.rel (0) target = $region25
    $region24: #{_forward_impl.1} parent=1 // pred_region
      _
    $region25: #{_forward_impl.1} parent=1 // pred_fallthru
      _
    %160 = vsyncpa [#allocation3], 1

</llo_original>
